<compile_context>
chip_gen: v5e
topology: v5e:2x2
jax: 0.10.0
libtpu: 0.0.40
codegen_flags: <defaults>
</compile_context>

<pallas_src>
import functools

import jax
import jax.numpy as jnp
from jax.experimental import pallas as pl
from jax.experimental.pallas import tpu as pltpu


def _round_up(n, m):
    return (n + m - 1) // m * m


def _default_compute_dtype():
    """bf16 matmul operands on v6e/v7x (bf16 MXU + bf16 VPU); f32 elsewhere."""
    try:
        kind = jax.devices()[0].device_kind.lower()
    except Exception:
        return jnp.float32
    if "v6" in kind or "v7" in kind:
        return jnp.bfloat16
    return jnp.float32


def ae_forward_kernel(xT_ref, w_ref, b_ref, oT_ref, *,
                      wl, hid, mid, offs, compute_dtype):
    """Fused 4-layer MLP autoencoder, feature-major (batch on the lane axis).

    y^T = W4 @ relu(W3 @ (W2 @ relu(W1 @ x^T + b1) + b2) + b3) + b4

    Weights are in PyTorch (out, in) layout inside one VMEM-resident slab,
    sliced with static offsets.  All matmuls accumulate in f32 on the MXU;
    activations are carried in `compute_dtype` between layers.
    """
    r1, r2, r3, r4 = offs
    x = xT_ref[...]                                               # (wl, TB)

    # Encoder
    h1 = jnp.dot(w_ref[r1:r1 + mid, :wl], x,
                 preferred_element_type=jnp.float32) + b_ref[r1:r1 + mid, :]
    h1 = jnp.maximum(h1, 0.0).astype(compute_dtype)               # (mid, TB)
    z = jnp.dot(w_ref[r2:r2 + hid, :mid], h1,
                preferred_element_type=jnp.float32) + b_ref[r2:r2 + hid, :]
    z = z.astype(compute_dtype)                                   # (hid, TB)

    # Decoder
    h2 = jnp.dot(w_ref[r3:r3 + mid, :hid], z,
                 preferred_element_type=jnp.float32) + b_ref[r3:r3 + mid, :]
    h2 = jnp.maximum(h2, 0.0).astype(compute_dtype)               # (mid, TB)
    y = jnp.dot(w_ref[r4:r4 + wl, :mid], h2,
                preferred_element_type=jnp.float32) + b_ref[r4:r4 + wl, :]

    oT_ref[...] = y.astype(oT_ref.dtype)                          # (wl, TB)


def ae_forward(x, params, *, tile_b=128, compute_dtype=None):
    """Run the fused autoencoder forward pass as a single batch-tiled Pallas call.

    x: (batch, window_length) float32
    params: PyTorch-layout parameters: w* of shape (out, in), b* of shape (out,).
    """
    if compute_dtype is None:
        compute_dtype = _default_compute_dtype()

    batch, wl = x.shape
    mid, wl_w = params["w1"].shape
    hid = params["w2"].shape[0]
    assert wl_w == wl
    assert tile_b % 128 == 0, "batch tile must keep the lane axis dense"

    # ---- pack the four weights / biases into single VMEM-resident slabs ----
    segs = [_round_up(mid, 16), _round_up(hid, 16),
            _round_up(mid, 16), _round_up(wl, 16)]
    r1 = 0
    r2 = r1 + segs[0]
    r3 = r2 + segs[1]
    r4 = r3 + segs[2]
    total_rows = r4 + segs[3]
    max_in = max(wl, hid, mid)

    w_slab = jnp.zeros((total_rows, max_in), compute_dtype)
    w_slab = w_slab.at[r1:r1 + mid, :wl].set(params["w1"].astype(compute_dtype))
    w_slab = w_slab.at[r2:r2 + hid, :mid].set(params["w2"].astype(compute_dtype))
    w_slab = w_slab.at[r3:r3 + mid, :hid].set(params["w3"].astype(compute_dtype))
    w_slab = w_slab.at[r4:r4 + wl, :mid].set(params["w4"].astype(compute_dtype))

    b_slab = jnp.zeros((total_rows, 1), jnp.float32)
    b_slab = b_slab.at[r1:r1 + mid, 0].set(params["b1"].astype(jnp.float32))
    b_slab = b_slab.at[r2:r2 + hid, 0].set(params["b2"].astype(jnp.float32))
    b_slab = b_slab.at[r3:r3 + mid, 0].set(params["b3"].astype(jnp.float32))
    b_slab = b_slab.at[r4:r4 + wl, 0].set(params["b4"].astype(jnp.float32))

    # ---- feature-major activations: pad batch to the tile and transpose ----
    bp = _round_up(batch, tile_b)
    xT = jnp.zeros((wl, bp), compute_dtype)
    xT = xT.at[:, :batch].set(x.T.astype(compute_dtype))

    kernel = functools.partial(
        ae_forward_kernel, wl=wl, hid=hid, mid=mid,
        offs=(r1, r2, r3, r4), compute_dtype=compute_dtype)

    # VMEM footprint per step is tiny (x/out blocks 2 * 16*128*4B double-buffered,
    # plus a ~45 KiB weight slab), far inside even v7x's 64 MiB VMEM, so no
    # explicit vmem_limit_bytes is needed.
    outT = pl.pallas_call(
        kernel,
        out_shape=jax.ShapeDtypeStruct((wl, bp), jnp.float32),
        grid=(bp // tile_b,),
        in_specs=[
            pl.BlockSpec((wl, tile_b), lambda i: (0, i)),          # x^T: streamed
            pl.BlockSpec((total_rows, max_in), lambda i: (0, 0)),  # weights: resident
            pl.BlockSpec((total_rows, 1), lambda i: (0, 0)),       # biases: resident
        ],
        out_specs=pl.BlockSpec((wl, tile_b), lambda i: (0, i)),
        compiler_params=pltpu.CompilerParams(
            dimension_semantics=("parallel",)),  # v7x: shard batch tiles over both TCs
    )(xT, w_slab, b_slab)

    return outT[:, :batch].T


def init_params(key, window_length, hidden, mid):
    """Deterministic synthetic parameters in native PyTorch nn.Linear layout."""
    ks = jax.random.split(key, 8)

    def linear(kw, kb, fan_in, fan_out):
        # Mimic PyTorch default init scale (uniform +/- 1/sqrt(fan_in)).
        bound = 1.0 / jnp.sqrt(jnp.float32(fan_in))
        w = jax.random.uniform(kw, (fan_out, fan_in), jnp.float32, -bound, bound)
        b = jax.random.uniform(kb, (fan_out,), jnp.float32, -bound, bound)
        return w, b

    w1, b1 = linear(ks[0], ks[1], window_length, mid)   # encoder L1
    w2, b2 = linear(ks[2], ks[3], mid, hidden)          # encoder L2
    w3, b3 = linear(ks[4], ks[5], hidden, mid)          # decoder L1
    w4, b4 = linear(ks[6], ks[7], mid, window_length)   # decoder L2
    return dict(w1=w1, b1=b1, w2=w2, b2=b2, w3=w3, b3=b3, w4=w4, b4=b4)


def ae_forward_ref(x, p):
    """Pure-JAX f32 reference (PyTorch Linear semantics) for correctness check."""
    h1 = jnp.maximum(x @ p["w1"].T + p["b1"], 0.0)
    z = h1 @ p["w2"].T + p["b2"]
    h2 = jnp.maximum(z @ p["w3"].T + p["b3"], 0.0)
    return h2 @ p["w4"].T + p["b4"]


if __name__ == "__main__":
    # Shapes consistent with the module:
    #   dataset.window_length = 16, hidden_layer_size = 32, mid = 2*hidden = 64
    # batch deliberately not a multiple of the 128-wide batch tile.
    batch = 300
    window_length = 16
    hidden = 32
    mid = hidden * 2

    key = jax.random.PRNGKey(0)
    k_x, k_p = jax.random.split(key)
    x = jax.random.normal(k_x, (batch, window_length), dtype=jnp.float32)
    params = init_params(k_p, window_length, hidden, mid)

    compute_dtype = _default_compute_dtype()
    out = ae_forward(x, params, tile_b=128, compute_dtype=compute_dtype)
    out = jax.block_until_ready(out)

    ref = ae_forward_ref(x, params)
    assert out.shape == (batch, window_length)
    if compute_dtype == jnp.bfloat16:
        atol, rtol = 3e-2, 5e-2   # bf16 matmul operands (f32 accumulation)
    else:
        atol, rtol = 1e-4, 1e-4   # full f32 path (v5e and others)
    assert jnp.allclose(out, ref, atol=atol, rtol=rtol), "mismatch vs JAX reference"

    print("KERNEL_OK")
</pallas_src>

<mosaic_0001>
module attributes {stable_mosaic.version = 11 : i64} {
  func.func @ae_forward_kernel(%arg0: i32, %arg1: memref<16x128xf32, #tpu.memory_space<vmem>>, %arg2: memref<176x64xf32, #tpu.memory_space<vmem>>, %arg3: memref<176x1xf32, #tpu.memory_space<vmem>>, %arg4: memref<16x128xf32, #tpu.memory_space<vmem>>) attributes {dimension_semantics = [#tpu.dimension_semantics<parallel>], iteration_bounds = array<i64: 3>, scalar_prefetch = 0 : i64, scratch_operands = 0 : i64, tpu.core_type = #tpu.core_type<tc>, window_params = [{transform_indices = @transform_0, window_bounds = array<i64: 16, 128>}, {pipeline_mode = #tpu.pipeline_mode<synchronous>, transform_indices = @transform_1, window_bounds = array<i64: 176, 64>}, {pipeline_mode = #tpu.pipeline_mode<synchronous>, transform_indices = @transform_2, window_bounds = array<i64: 176, 1>}, {transform_indices = @transform_3, window_bounds = array<i64: 16, 128>}]} {
    %c0 = arith.constant 0 : index
    %c0_0 = arith.constant 0 : index
    %0 = vector.load %arg1[%c0, %c0_0] : memref<16x128xf32, #tpu.memory_space<vmem>>, vector<16x128xf32>
    %c0_1 = arith.constant 0 : index
    %c0_2 = arith.constant 0 : index
    %1 = vector.load %arg2[%c0_1, %c0_2] : memref<176x64xf32, #tpu.memory_space<vmem>>, vector<64x16xf32>
    %cst = arith.constant dense<0.000000e+00> : vector<64x128xf32>
    %2 = tpu.matmul %1, %0, %cst {dimension_numbers = #tpu.dot_dimension_numbers<[1], [0], [0], [1], [0, 0, 1, 1], [], []>} : vector<64x16xf32>, vector<16x128xf32>, vector<64x128xf32> -> vector<64x128xf32>
    %c0_3 = arith.constant 0 : index
    %c0_4 = arith.constant 0 : index
    %3 = vector.load %arg3[%c0_3, %c0_4] : memref<176x1xf32, #tpu.memory_space<vmem>>, vector<64x1xf32>
    %4 = vector.broadcast %3 : vector<64x1xf32> to vector<64x128xf32>
    %5 = arith.addf %2, %4 : vector<64x128xf32>
    %cst_5 = arith.constant 0.000000e+00 : f32
    %6 = vector.broadcast %cst_5 : f32 to vector<64x128xf32>
    %7 = arith.maximumf %5, %6 : vector<64x128xf32>
    %c64 = arith.constant 64 : index
    %c0_6 = arith.constant 0 : index
    %8 = vector.load %arg2[%c64, %c0_6] : memref<176x64xf32, #tpu.memory_space<vmem>>, vector<32x64xf32>
    %cst_7 = arith.constant dense<0.000000e+00> : vector<32x128xf32>
    %9 = tpu.matmul %8, %7, %cst_7 {dimension_numbers = #tpu.dot_dimension_numbers<[1], [0], [0], [1], [0, 0, 1, 1], [], []>} : vector<32x64xf32>, vector<64x128xf32>, vector<32x128xf32> -> vector<32x128xf32>
    %c64_8 = arith.constant 64 : index
    %c0_9 = arith.constant 0 : index
    %10 = vector.load %arg3[%c64_8, %c0_9] : memref<176x1xf32, #tpu.memory_space<vmem>>, vector<32x1xf32>
    %11 = vector.broadcast %10 : vector<32x1xf32> to vector<32x128xf32>
    %12 = arith.addf %9, %11 : vector<32x128xf32>
    %c96 = arith.constant 96 : index
    %c0_10 = arith.constant 0 : index
    %13 = vector.load %arg2[%c96, %c0_10] : memref<176x64xf32, #tpu.memory_space<vmem>>, vector<64x32xf32>
    %cst_11 = arith.constant dense<0.000000e+00> : vector<64x128xf32>
    %14 = tpu.matmul %13, %12, %cst_11 {dimension_numbers = #tpu.dot_dimension_numbers<[1], [0], [0], [1], [0, 0, 1, 1], [], []>} : vector<64x32xf32>, vector<32x128xf32>, vector<64x128xf32> -> vector<64x128xf32>
    %c96_12 = arith.constant 96 : index
    %c0_13 = arith.constant 0 : index
    %15 = vector.load %arg3[%c96_12, %c0_13] : memref<176x1xf32, #tpu.memory_space<vmem>>, vector<64x1xf32>
    %16 = vector.broadcast %15 : vector<64x1xf32> to vector<64x128xf32>
    %17 = arith.addf %14, %16 : vector<64x128xf32>
    %cst_14 = arith.constant 0.000000e+00 : f32
    %18 = vector.broadcast %cst_14 : f32 to vector<64x128xf32>
    %19 = arith.maximumf %17, %18 : vector<64x128xf32>
    %c160 = arith.constant 160 : index
    %c0_15 = arith.constant 0 : index
    %20 = vector.load %arg2[%c160, %c0_15] : memref<176x64xf32, #tpu.memory_space<vmem>>, vector<16x64xf32>
    %cst_16 = arith.constant dense<0.000000e+00> : vector<16x128xf32>
    %21 = tpu.matmul %20, %19, %cst_16 {dimension_numbers = #tpu.dot_dimension_numbers<[1], [0], [0], [1], [0, 0, 1, 1], [], []>} : vector<16x64xf32>, vector<64x128xf32>, vector<16x128xf32> -> vector<16x128xf32>
    %c160_17 = arith.constant 160 : index
    %c0_18 = arith.constant 0 : index
    %22 = vector.load %arg3[%c160_17, %c0_18] : memref<176x1xf32, #tpu.memory_space<vmem>>, vector<16x1xf32>
    %23 = vector.broadcast %22 : vector<16x1xf32> to vector<16x128xf32>
    %24 = arith.addf %21, %23 : vector<16x128xf32>
    %c0_19 = arith.constant 0 : index
    %c0_20 = arith.constant 0 : index
    %25 = vector.load %arg4[%c0_19, %c0_20] : memref<16x128xf32, #tpu.memory_space<vmem>>, vector<16x128xf32>
    tpu.vector_store %arg4[%c0_19, %c0_20], %24 {strides = array<i32>} : memref<16x128xf32, #tpu.memory_space<vmem>>, vector<16x128xf32>,
    return
  }
  func.func @transform_0(%arg0: i32) -> (i32, i32) {
    %c0_i32 = arith.constant 0 : i32
    %c0_i32_0 = arith.constant 0 : i32
    return %c0_i32, %arg0 : i32, i32
  }
  func.func @transform_1(%arg0: i32) -> (i32, i32) {
    %c0_i32 = arith.constant 0 : i32
    %c0_i32_0 = arith.constant 0 : i32
    %c0_i32_1 = arith.constant 0 : i32
    return %c0_i32, %c0_i32_0 : i32, i32
  }
  func.func @transform_2(%arg0: i32) -> (i32, i32) {
    %c0_i32 = arith.constant 0 : i32
    %c0_i32_0 = arith.constant 0 : i32
    %c0_i32_1 = arith.constant 0 : i32
    return %c0_i32, %c0_i32_0 : i32, i32
  }
  func.func @transform_3(%arg0: i32) -> (i32, i32) {
    %c0_i32 = arith.constant 0 : i32
    %c0_i32_0 = arith.constant 0 : i32
    return %c0_i32, %arg0 : i32, i32
  }
}

</mosaic_0001>

<llo_original>
// kernel: tpu_custom_call.1
$region0: #{tpu_custom_call.1}
  #allocation0 [shape = 'u32[]', space=smem, size = 0x4, offset = 0x4, fixed_abs, tag = 'smem constant byte address 0x4 - core index']
  #allocation1 [shape = 'u32[72,128]{1,0:T(1,128)}', space=vmem, size = 0x9000, scoped, tag = 'internal scratch']
  %s0 = inlined_call_operand.vmem [shape: f32[16,384], index: 0, kind: input, shape index: {}]
  %s1 = inlined_call_operand.vmem [shape: f32[176,64], index: 1, kind: input, shape index: {}]
  %s2 = inlined_call_operand.vmem [shape: f32[176,1], index: 2, kind: input, shape index: {}]
  %s3 = inlined_call_operand.hbm [shape: f32[16,384], index: 3, kind: output, shape index: {}]
  %s4 = sld [smem:[#allocation0]]
  $region83: #{tpu_custom_call.1} parent=0
    _
  %s6 = ssub.s32 1, %s4
  %s7 = scalar_select 0, %s6, %s4
  $region1: #{tpu_custom_call.1} parent=0
    #allocation2 [shape = 'u8[16384]{0}', space=vmem, size = 0x4000, scoped, tag = 'input window, operand 0']
    #allocation3 [shape = 'u8[16384]{0}', space=vmem, size = 0x4000, scoped, tag = 'output window, operand 0']
    #allocation4 [shape = 's32[2]{0}', space=sflag, size = 0x8, scoped, tag = 'scoped memory for tpu_custom_call.1']
    %8 = vsyncpa [#allocation4], 0
    %s9 = scalar_lea.sflag [#allocation4], 1
    %10 = vsyncpa %s9, 0
    loop: start=0, step=1, limit=5
    $region2: #{tpu_custom_call.1} parent=1 // loop_pre_header
      _
    $region3: #{tpu_custom_call.1} parent=1 // loop_header
      %s12 = sphi 0, %s16
      %p13 = scmp.ge.s32.totalorder %s12, 5
      %s22 = sphi 0, %s24
      %s25 = sphi 0, %s22
      %s26 = sphi 0, %s25
      %s42 = sphi 0, %s26
      %s46 = sphi 0, %s46
      %s48 = sphi 0, %s46
      %s49 = sphi 0, %s48
      %s63 = sphi 0, %s49
      %s67 = sphi 0, %s67
      %s69 = sphi 0, %s67
      %s70 = sphi 0, %s69
      %s84 = sphi 0, %s70
      %s90 = sphi 0, %s92
      %s93 = sphi 0, %s90
      %s94 = sphi 0, %s93
      %s110 = sphi 0, %s94
    $region4: #{tpu_custom_call.1} parent=1 // loop_header_branch
      %15 = sbr.rel (%p13) target = $region8
    $region5: #{tpu_custom_call.1} parent=1 // loop_body
      %s17 = ssub.s32 %s12, 1
      %s18 = ssub.s32 %s12, 2
      %s19 = sadd.s32 %s12, 1
      %s20 = ssub.s32 %s12, %s19
      %p21 = scmp.eq.s32.totalorder %s20, 0
      %s23 = sadd.s32 %s22, 1
      %s24 = scalar_select %p21, %s22, %s23
      %p27 = pneg %p21
      %p28 = scmp.eq.s32.totalorder %s12, 2
      %p29 = por %p27, %p28
      %p30 = scmp.ne.s32.totalorder %s22, %s25
      %p31 = scmp.eq.s32.totalorder %s12, 0
      %p32 = por %p30, %p31
      %p33 = scmp.ne.s32.totalorder %s22, %s25
      %p34 = scmp.eq.s32.totalorder %s17, 2
      %p35 = por %p33, %p34
      %p36 = scmp.ne.s32.totalorder %s25, %s26
      %p37 = scmp.eq.s32.totalorder %s17, 0
      %p38 = por %p36, %p37
      %p39 = scmp.ne.s32.totalorder %s25, %s26
      %p40 = scmp.eq.s32.totalorder %s18, 2
      %p41 = por %p39, %p40
      %p43 = scmp.ne.s32.totalorder %s26, %s42
      %p44 = scmp.eq.s32.totalorder %s18, 0
      %p45 = por %p43, %p44
      %s47 = sadd.s32 %s46, 1
      %p50 = scmp.eq.s32.totalorder %s12, 2
      %p51 = scmp.ne.s32.totalorder %s46, %s48
      %p52 = scmp.eq.s32.totalorder %s12, 0
      %p53 = por %p51, %p52
      %p54 = scmp.ne.s32.totalorder %s46, %s48
      %p55 = scmp.eq.s32.totalorder %s17, 2
      %p56 = por %p54, %p55
      %p57 = scmp.ne.s32.totalorder %s48, %s49
      %p58 = scmp.eq.s32.totalorder %s17, 0
      %p59 = por %p57, %p58
      %p60 = scmp.ne.s32.totalorder %s48, %s49
      %p61 = scmp.eq.s32.totalorder %s18, 2
      %p62 = por %p60, %p61
      %p64 = scmp.ne.s32.totalorder %s49, %s63
      %p65 = scmp.eq.s32.totalorder %s18, 0
      %p66 = por %p64, %p65
      %s68 = sadd.s32 %s67, 1
      %p71 = scmp.eq.s32.totalorder %s12, 2
      %p72 = scmp.ne.s32.totalorder %s67, %s69
      %p73 = scmp.eq.s32.totalorder %s12, 0
      %p74 = por %p72, %p73
      %p75 = scmp.ne.s32.totalorder %s67, %s69
      %p76 = scmp.eq.s32.totalorder %s17, 2
      %p77 = por %p75, %p76
      %p78 = scmp.ne.s32.totalorder %s69, %s70
      %p79 = scmp.eq.s32.totalorder %s17, 0
      %p80 = por %p78, %p79
      %p81 = scmp.ne.s32.totalorder %s69, %s70
      %p82 = scmp.eq.s32.totalorder %s18, 2
      %p83 = por %p81, %p82
      %p85 = scmp.ne.s32.totalorder %s70, %s84
      %p86 = scmp.eq.s32.totalorder %s18, 0
      %p87 = por %p85, %p86
      %s88 = ssub.s32 %s12, %s19
      %p89 = scmp.eq.s32.totalorder %s88, 0
      %s91 = sadd.s32 %s90, 1
      %s92 = scalar_select %p89, %s90, %s91
      %p95 = pneg %p89
      %p96 = scmp.eq.s32.totalorder %s12, 2
      %p97 = por %p95, %p96
      %p98 = scmp.ne.s32.totalorder %s90, %s93
      %p99 = scmp.eq.s32.totalorder %s12, 0
      %p100 = por %p98, %p99
      %p101 = scmp.ne.s32.totalorder %s90, %s93
      %p102 = scmp.eq.s32.totalorder %s17, 2
      %p103 = por %p101, %p102
      %p104 = scmp.ne.s32.totalorder %s93, %s94
      %p105 = scmp.eq.s32.totalorder %s17, 0
      %p106 = por %p104, %p105
      %p107 = scmp.ne.s32.totalorder %s93, %s94
      %p108 = scmp.eq.s32.totalorder %s18, 2
      %p109 = por %p107, %p108
      %p111 = scmp.ne.s32.totalorder %s94, %s110
      %p112 = scmp.eq.s32.totalorder %s18, 0
      %p113 = por %p111, %p112
      %p114 = scmp.le.s32.totalorder 1, %s12
      %p115 = scmp.lt.s32.totalorder %s12, 4
      %p116 = pnand %p114, %p115
      %p117 = pneg %p116
      // Predicated region
      $region9: #{tpu_custom_call.1} parent=5 // pred_check
        _
      $region10: #{tpu_custom_call.1} parent=5 // pred_check_branch
        %119 = sbr.rel (%p116) target = $region12
      $region11: #{tpu_custom_call.1} parent=5 // pred_region
        %s120 = ssub.s32 %s12, 1
        // Predicated region
        $region13: #{tpu_custom_call.1} parent=11 // pred_check
          %p121 = pneg %p59
        $region14: #{tpu_custom_call.1} parent=11 // pred_check_branch
          %123 = sbr.rel (%p121) target = $region16
        $region15: #{tpu_custom_call.1} parent=11 // pred_region
          _
        $region16: #{tpu_custom_call.1} parent=11 // pred_fallthru
          _
        // Predicated region
        $region17: #{tpu_custom_call.1} parent=11 // pred_check
          %p124 = pneg %p80
        $region18: #{tpu_custom_call.1} parent=11 // pred_check_branch
          %126 = sbr.rel (%p124) target = $region20
        $region19: #{tpu_custom_call.1} parent=11 // pred_region
          _
        $region20: #{tpu_custom_call.1} parent=11 // pred_fallthru
          _
      $region12: #{tpu_custom_call.1} parent=5 // pred_fallthru
        _
      %p127 = scmp.lt.s32.totalorder %s12, 3
      // Predicated region
      $region21: #{tpu_custom_call.1} parent=5 // pred_check
        %p128 = pneg %p127
      $region22: #{tpu_custom_call.1} parent=5 // pred_check_branch
        %130 = sbr.rel (%p128) target = $region24
      $region23: #{tpu_custom_call.1} parent=5 // pred_region
        // Predicated region
        $region25: #{tpu_custom_call.1} parent=23 // pred_check
          %p131 = pneg %p32
        $region26: #{tpu_custom_call.1} parent=23 // pred_check_branch
          %133 = sbr.rel (%p131) target = $region28
        $region27: #{tpu_custom_call.1} parent=23 // pred_region
          %s134 = sand.u32 %s22, 1
          %s135 = sand.u32 %s22, 1
          %s136 = smul.addr %s135, 16
          %s137 = scalar_lea.vmem [#allocation2], %s136
          %s138 = smul.addr %s12, 8
          %s139 = scalar_lea.vmem %s0, %s138
          // Predicated region
          $region29: #{tpu_custom_call.1} parent=27 // pred_check
            _
          $region30: #{tpu_custom_call.1} parent=27 // pred_check_branch
            %141 = sbr.rel (0) target = $region32
          $region31: #{tpu_custom_call.1} parent=27 // pred_region
            // Predicated region
            $region33: #{tpu_custom_call.1} parent=31 // pred_check
              _
            $region34: #{tpu_custom_call.1} parent=31 // pred_check_branch
              %143 = sbr.rel (0) target = $region36
            $region35: #{tpu_custom_call.1} parent=31 // pred_region
              // Predicated region
              $region48: #{tpu_custom_call.1} parent=35 // pred_check
                _
              $region49: #{tpu_custom_call.1} parent=35 // pred_check_branch
                %161 = sbr.rel (0) target = $region51
              $region50: #{tpu_custom_call.1} parent=35 // pred_region
                loop: start=0, step=1, limit=1
                $region52: #{tpu_custom_call.1} parent=50 // loop_pre_header
                  _
                $region53: #{tpu_custom_call.1} parent=50 // loop_header
                  %s163 = sphi 0, %s167
                  %p164 = scmp.ge.s32.totalorder %s163, 1
                  %s168 = sphi %s139, %s139
                  %s169 = sphi %s137, %s137
                $region54: #{tpu_custom_call.1} parent=50 // loop_header_branch
                  %166 = sbr.rel (%p164) target = $region58
                $region55: #{tpu_custom_call.1} parent=50 // loop_body
                  %v170 = vld [vmem:[%s168] sm:$0xff]
                  %171 = vst [vmem:[%s169] sm:$0xff] %v170
                  %v172 = vld [vmem:[%s168 + $0x18] sm:$0xff]
                  %173 = vst [vmem:[%s169 + $0x8] sm:$0xff] %v172
                $region56: #{tpu_custom_call.1} parent=50 // loop_footer
                  %s167 = sadd.s32 1, %s163
                $region57: #{tpu_custom_call.1} parent=50 // loop_footer_branch
                  %162 = sbr.rel target = $region53
                $region58: #{tpu_custom_call.1} parent=50 // loop_exit
                  _
              $region51: #{tpu_custom_call.1} parent=35 // pred_fallthru
                _
              // Predicated region
              $region59: #{tpu_custom_call.1} parent=35 // pred_check
                _
              $region60: #{tpu_custom_call.1} parent=35 // pred_check_branch
                %175 = sbr.rel target = $region62
              $region61: #{tpu_custom_call.1} parent=35 // pred_region
                _
              $region62: #{tpu_custom_call.1} parent=35 // pred_fallthru
                _
            $region36: #{tpu_custom_call.1} parent=31 // pred_fallthru
              _
            // Predicated region
            $region37: #{tpu_custom_call.1} parent=31 // pred_check
              _
            $region38: #{tpu_custom_call.1} parent=31 // pred_check_branch
              %145 = sbr.rel target = $region40
            $region39: #{tpu_custom_call.1} parent=31 // pred_region
              %s147 = ssub.s32 256, 1
              loop: start=0, step=1, limit=1
              $region41: #{tpu_custom_call.1} parent=39 // loop_pre_header
                _
              $region42: #{tpu_custom_call.1} parent=39 // loop_header
                %s149 = sphi 0, %s153
                %p150 = scmp.ge.s32.totalorder %s149, 1
                %s154 = sphi %s139, %s139
                %s155 = sphi %s137, %s137
              $region43: #{tpu_custom_call.1} parent=39 // loop_header_branch
                %152 = sbr.rel (%p150) target = $region47
              $region44: #{tpu_custom_call.1} parent=39 // loop_body
                %v156 = vld [vmem:[%s154] sm:%s147]
                %157 = vst [vmem:[%s155] sm:%s147] %v156
                %v158 = vld [vmem:[%s154 + $0x18] sm:%s147]
                %159 = vst [vmem:[%s155 + $0x8] sm:%s147] %v158
              $region45: #{tpu_custom_call.1} parent=39 // loop_footer
                %s153 = sadd.s32 1, %s149
              $region46: #{tpu_custom_call.1} parent=39 // loop_footer_branch
                %148 = sbr.rel target = $region42
              $region47: #{tpu_custom_call.1} parent=39 // loop_exit
                _
            $region40: #{tpu_custom_call.1} parent=31 // pred_fallthru
              _
          $region32: #{tpu_custom_call.1} parent=27 // pred_fallthru
            _
          %176 = vnop
        $region28: #{tpu_custom_call.1} parent=23 // pred_fallthru
          _
      $region24: #{tpu_custom_call.1} parent=5 // pred_fallthru
        _
      %p177 = scmp.le.s32.totalorder 1, %s12
      %p178 = scmp.lt.s32.totalorder %s12, 4
      %p179 = pnand %p177, %p178
      %p180 = pneg %p179
      // Predicated region
      $region63: #{tpu_custom_call.1} parent=5 // pred_check
        _
      $region64: #{tpu_custom_call.1} parent=5 // pred_check_branch
        %182 = sbr.rel (%p179) target = $region66
      $region65: #{tpu_custom_call.1} parent=5 // pred_region
        %s183 = ssub.s32 %s12, 1
        %s184 = sand.u32 %s25, 1
        %s185 = sand.u32 %s25, 1
        %s186 = smul.addr %s185, 16
        %s187 = scalar_lea.vmem [#allocation2], %s186
        // Predicated region
        $region67: #{tpu_custom_call.1} parent=65 // pred_check
          %p188 = pneg %p38
        $region68: #{tpu_custom_call.1} parent=65 // pred_check_branch
          %190 = sbr.rel (%p188) target = $region70
        $region69: #{tpu_custom_call.1} parent=65 // pred_region
          _
        $region70: #{tpu_custom_call.1} parent=65 // pred_fallthru
          _
        %s191 = sand.u32 %s25, 1
        %s192 = sand.u32 %s25, 1
        %s193 = smul.addr %s192, 16
        %s194 = scalar_lea.vmem [#allocation2], %s193
        %p195 = pneg %p38
        %p196 = pneg %p35
        %p197 = pneg %p59
        %p198 = pneg %p56
        %p199 = pneg %p80
        %p200 = pneg %p77
        %p201 = pneg %p106
        %p202 = pneg %p103
        %s203 = sand.u32 %s93, 1
        %s204 = scalar_lea.sflag [#allocation4], %s203
        %s205 = sand.u32 %s93, 1
        %s206 = smul.addr %s205, 16
        %s207 = scalar_lea.vmem [#allocation3], %s206
        %v208 = vld [vmem:[%s187] sm:$0xff]
        %v209 = vld [vmem:[%s187 + $0x8] sm:$0xff]
        %v210 = vld [vmem:[%s1] sm:$0xff]
        %v211 = vld [vmem:[%s1 + $0x8] sm:$0xff]
        %v212 = vld [vmem:[%s1 + $0x10] sm:$0xff]
        %v213 = vld [vmem:[%s1 + $0x18] sm:$0xff]
        %v214 = vld [vmem:[%s1 + $0x20] sm:$0xff]
        %v215 = vld [vmem:[%s1 + $0x28] sm:$0xff]
        %v216 = vld [vmem:[%s1 + $0x30] sm:$0xff]
        %v217 = vld [vmem:[%s1 + $0x38] sm:$0xff]
        %v218 = vld [vmem:[%s2] sm:$0xff]
        %v219 = vld [vmem:[%s2 + $0x8] sm:$0xff]
        %v220 = vld [vmem:[%s2 + $0x10] sm:$0xff]
        %v221 = vld [vmem:[%s2 + $0x18] sm:$0xff]
        %v222 = vld [vmem:[%s2 + $0x20] sm:$0xff]
        %v223 = vld [vmem:[%s2 + $0x28] sm:$0xff]
        %v224 = vld [vmem:[%s2 + $0x30] sm:$0xff]
        %v225 = vld [vmem:[%s2 + $0x38] sm:$0xff]
        %227 = vset.pattern.permute.xlu0 0
        %228 = vperm.xlu0 %227, %v218
        %v229 = vpop.permute.xlu0 %228
        %232 = vset.pattern.permute.xlu0 0
        %233 = vperm.xlu0 %232, %v219
        %v234 = vpop.permute.xlu0 %233
        %237 = vset.pattern.permute.xlu0 0
        %238 = vperm.xlu0 %237, %v220
        %v239 = vpop.permute.xlu0 %238
        %242 = vset.pattern.permute.xlu0 0
        %243 = vperm.xlu0 %242, %v221
        %v244 = vpop.permute.xlu0 %243
        %247 = vset.pattern.permute.xlu0 0
        %248 = vperm.xlu0 %247, %v222
        %v249 = vpop.permute.xlu0 %248
        %252 = vset.pattern.permute.xlu0 0
        %253 = vperm.xlu0 %252, %v223
        %v254 = vpop.permute.xlu0 %253
        %257 = vset.pattern.permute.xlu0 0
        %258 = vperm.xlu0 %257, %v224
        %v259 = vpop.permute.xlu0 %258
        %262 = vset.pattern.permute.xlu0 0
        %263 = vperm.xlu0 %262, %v225
        %v264 = vpop.permute.xlu0 %263
        %vm266 = vcmask 130048
        %v268 = vsel %vm266, %v210, 0
        %v271 = vsel %vm266, %v211, 0
        %v274 = vsel %vm266, %v212, 0
        %v277 = vsel %vm266, %v213, 0
        %v280 = vsel %vm266, %v214, 0
        %v283 = vsel %vm266, %v215, 0
        %v286 = vsel %vm266, %v216, 0
        %v289 = vsel %vm266, %v217, 0
        %291 = vmatpush.msra.mxu0 0.0
        %292 = vmatpush.msra.mxu0 0.0
        %293 = vmatpush.msra.mxu0 0.0
        %294 = vmatpush.msra.mxu0 0.0
        %295 = vmatpush.msra.mxu0 0.0
        %296 = vmatpush.msra.mxu0 0.0
        %297 = vmatpush.msra.mxu0 0.0
        %298 = vmatpush.msra.mxu0 0.0
        %299 = vmatpush.msra.mxu0 0.0
        %300 = vmatpush.msra.mxu0 0.0
        %301 = vmatpush.msra.mxu0 0.0
        %302 = vmatpush.msra.mxu0 0.0
        %303 = vmatpush.msra.mxu0 0.0
        %304 = vmatpush.msra.mxu0 0.0
        %305 = vmatpush.msra.mxu0 %v209
        %306 = vmatpush.msra.mxu0 %v208
        %307 = vmatmul.f32.gmra.mxu0 %v268
        %v308 = vpop.f32.mrf.mxu0
        %v309 = vadd.f32 %v229, %v308
        %310 = vmatmul.f32.gmra.mxu0 %v271
        %v311 = vpop.f32.mrf.mxu0
        %v312 = vadd.f32 %v234, %v311
        %313 = vmatmul.f32.gmra.mxu0 %v274
        %v314 = vpop.f32.mrf.mxu0
        %v315 = vadd.f32 %v239, %v314
        %316 = vmatmul.f32.gmra.mxu0 %v277
        %v317 = vpop.f32.mrf.mxu0
        %v318 = vadd.f32 %v244, %v317
        %319 = vmatmul.f32.gmra.mxu0 %v280
        %v320 = vpop.f32.mrf.mxu0
        %v321 = vadd.f32 %v249, %v320
        %322 = vmatmul.f32.gmra.mxu0 %v283
        %v323 = vpop.f32.mrf.mxu0
        %v324 = vadd.f32 %v254, %v323
        %325 = vmatmul.f32.gmra.mxu0 %v286
        %v326 = vpop.f32.mrf.mxu0
        %v327 = vadd.f32 %v259, %v326
        %328 = vmatmul.f32.gmra.mxu0 %v289
        %v329 = vpop.f32.mrf.mxu0
        %v330 = vadd.f32 %v264, %v329
        %331 = vdwg.mxu0
        %v332 = vmax.f32 %v309, 0.0
        %v333 = vmax.f32 %v312, 0.0
        %v334 = vmax.f32 %v315, 0.0
        %v335 = vmax.f32 %v318, 0.0
        %v336 = vmax.f32 %v321, 0.0
        %v337 = vmax.f32 %v324, 0.0
        %v338 = vmax.f32 %v327, 0.0
        %v339 = vmax.f32 %v330, 0.0
        %v340 = vld [vmem:[%s1 + $0x40] sm:$0xff]
        %v341 = vld [vmem:[%s1 + $0x48] sm:$0xff]
        %v342 = vld [vmem:[%s1 + $0x50] sm:$0xff]
        %v343 = vld [vmem:[%s1 + $0x58] sm:$0xff]
        %v344 = vld [vmem:[%s2 + $0x40] sm:$0xff]
        %v345 = vld [vmem:[%s2 + $0x48] sm:$0xff]
        %v346 = vld [vmem:[%s2 + $0x50] sm:$0xff]
        %v347 = vld [vmem:[%s2 + $0x58] sm:$0xff]
        %349 = vset.pattern.permute.xlu0 0
        %350 = vperm.xlu0 %349, %v344
        %v351 = vpop.permute.xlu0 %350
        %354 = vset.pattern.permute.xlu0 0
        %355 = vperm.xlu0 %354, %v345
        %v356 = vpop.permute.xlu0 %355
        %359 = vset.pattern.permute.xlu0 0
        %360 = vperm.xlu0 %359, %v346
        %v361 = vpop.permute.xlu0 %360
        %364 = vset.pattern.permute.xlu0 0
        %365 = vperm.xlu0 %364, %v347
        %v366 = vpop.permute.xlu0 %365
        %vm368 = vcmask 523264
        %v370 = vsel %vm368, %v340, 0
        %v373 = vsel %vm368, %v341, 0
        %v376 = vsel %vm368, %v342, 0
        %v379 = vsel %vm368, %v343, 0
        %381 = vmatpush.msra.mxu0 0.0
        %382 = vmatpush.msra.mxu0 0.0
        %383 = vmatpush.msra.mxu0 0.0
        %384 = vmatpush.msra.mxu0 0.0
        %385 = vmatpush.msra.mxu0 0.0
        %386 = vmatpush.msra.mxu0 0.0
        %387 = vmatpush.msra.mxu0 0.0
        %388 = vmatpush.msra.mxu0 0.0
        %389 = vmatpush.msra.mxu0 %v339
        %390 = vmatpush.msra.mxu0 %v338
        %391 = vmatpush.msra.mxu0 %v337
        %392 = vmatpush.msra.mxu0 %v336
        %393 = vmatpush.msra.mxu0 %v335
        %394 = vmatpush.msra.mxu0 %v334
        %395 = vmatpush.msra.mxu0 %v333
        %396 = vmatpush.msra.mxu0 %v332
        %397 = vmatmul.f32.gmra.mxu0 %v370
        %v398 = vpop.f32.mrf.mxu0
        %v399 = vadd.f32 %v351, %v398
        %400 = vmatmul.f32.gmra.mxu0 %v373
        %v401 = vpop.f32.mrf.mxu0
        %v402 = vadd.f32 %v356, %v401
        %403 = vmatmul.f32.gmra.mxu0 %v376
        %v404 = vpop.f32.mrf.mxu0
        %v405 = vadd.f32 %v361, %v404
        %406 = vmatmul.f32.gmra.mxu0 %v379
        %v407 = vpop.f32.mrf.mxu0
        %v408 = vadd.f32 %v366, %v407
        %409 = vdwg.mxu0
        %v410 = vld [vmem:[%s1 + $0x60] sm:$0xff]
        %v411 = vld [vmem:[%s1 + $0x68] sm:$0xff]
        %v412 = vld [vmem:[%s1 + $0x70] sm:$0xff]
        %v413 = vld [vmem:[%s1 + $0x78] sm:$0xff]
        %v414 = vld [vmem:[%s1 + $0x80] sm:$0xff]
        %v415 = vld [vmem:[%s1 + $0x88] sm:$0xff]
        %v416 = vld [vmem:[%s1 + $0x90] sm:$0xff]
        %v417 = vld [vmem:[%s1 + $0x98] sm:$0xff]
        %v418 = vld [vmem:[%s2 + $0x60] sm:$0xff]
        %v419 = vld [vmem:[%s2 + $0x68] sm:$0xff]
        %v420 = vld [vmem:[%s2 + $0x70] sm:$0xff]
        %v421 = vld [vmem:[%s2 + $0x78] sm:$0xff]
        %v422 = vld [vmem:[%s2 + $0x80] sm:$0xff]
        %v423 = vld [vmem:[%s2 + $0x88] sm:$0xff]
        %v424 = vld [vmem:[%s2 + $0x90] sm:$0xff]
        %v425 = vld [vmem:[%s2 + $0x98] sm:$0xff]
        %427 = vset.pattern.permute.xlu0 0
        %428 = vperm.xlu0 %427, %v418
        %v429 = vpop.permute.xlu0 %428
        %432 = vset.pattern.permute.xlu0 0
        %433 = vperm.xlu0 %432, %v419
        %v434 = vpop.permute.xlu0 %433
        %437 = vset.pattern.permute.xlu0 0
        %438 = vperm.xlu0 %437, %v420
        %v439 = vpop.permute.xlu0 %438
        %442 = vset.pattern.permute.xlu0 0
        %443 = vperm.xlu0 %442, %v421
        %v444 = vpop.permute.xlu0 %443
        %447 = vset.pattern.permute.xlu0 0
        %448 = vperm.xlu0 %447, %v422
        %v449 = vpop.permute.xlu0 %448
        %452 = vset.pattern.permute.xlu0 0
        %453 = vperm.xlu0 %452, %v423
        %v454 = vpop.permute.xlu0 %453
        %457 = vset.pattern.permute.xlu0 0
        %458 = vperm.xlu0 %457, %v424
        %v459 = vpop.permute.xlu0 %458
        %462 = vset.pattern.permute.xlu0 0
        %463 = vperm.xlu0 %462, %v425
        %v464 = vpop.permute.xlu0 %463
        %vm466 = vcmask 261120
        %v468 = vsel %vm466, %v410, 0
        %v471 = vsel %vm466, %v411, 0
        %v474 = vsel %vm466, %v412, 0
        %v477 = vsel %vm466, %v413, 0
        %v480 = vsel %vm466, %v414, 0
        %v483 = vsel %vm466, %v415, 0
        %v486 = vsel %vm466, %v416, 0
        %v489 = vsel %vm466, %v417, 0
        %491 = vmatpush.msra.mxu0 0.0
        %492 = vmatpush.msra.mxu0 0.0
        %493 = vmatpush.msra.mxu0 0.0
        %494 = vmatpush.msra.mxu0 0.0
        %495 = vmatpush.msra.mxu0 0.0
        %496 = vmatpush.msra.mxu0 0.0
        %497 = vmatpush.msra.mxu0 0.0
        %498 = vmatpush.msra.mxu0 0.0
        %499 = vmatpush.msra.mxu0 0.0
        %500 = vmatpush.msra.mxu0 0.0
        %501 = vmatpush.msra.mxu0 0.0
        %502 = vmatpush.msra.mxu0 0.0
        %503 = vmatpush.msra.mxu0 %v408
        %504 = vmatpush.msra.mxu0 %v405
        %505 = vmatpush.msra.mxu0 %v402
        %506 = vmatpush.msra.mxu0 %v399
        %507 = vmatmul.f32.gmra.mxu0 %v468
        %v508 = vpop.f32.mrf.mxu0
        %v509 = vadd.f32 %v429, %v508
        %510 = vmatmul.f32.gmra.mxu0 %v471
        %v511 = vpop.f32.mrf.mxu0
        %v512 = vadd.f32 %v434, %v511
        %513 = vmatmul.f32.gmra.mxu0 %v474
        %v514 = vpop.f32.mrf.mxu0
        %v515 = vadd.f32 %v439, %v514
        %516 = vmatmul.f32.gmra.mxu0 %v477
        %v517 = vpop.f32.mrf.mxu0
        %v518 = vadd.f32 %v444, %v517
        %519 = vmatmul.f32.gmra.mxu0 %v480
        %v520 = vpop.f32.mrf.mxu0
        %v521 = vadd.f32 %v449, %v520
        %522 = vmatmul.f32.gmra.mxu0 %v483
        %v523 = vpop.f32.mrf.mxu0
        %v524 = vadd.f32 %v454, %v523
        %525 = vmatmul.f32.gmra.mxu0 %v486
        %v526 = vpop.f32.mrf.mxu0
        %v527 = vadd.f32 %v459, %v526
        %528 = vmatmul.f32.gmra.mxu0 %v489
        %v529 = vpop.f32.mrf.mxu0
        %v530 = vadd.f32 %v464, %v529
        %531 = vdwg.mxu0
        %v532 = vmax.f32 %v509, 0.0
        %v533 = vmax.f32 %v512, 0.0
        %v534 = vmax.f32 %v515, 0.0
        %v535 = vmax.f32 %v518, 0.0
        %v536 = vmax.f32 %v521, 0.0
        %v537 = vmax.f32 %v524, 0.0
        %v538 = vmax.f32 %v527, 0.0
        %v539 = vmax.f32 %v530, 0.0
        %v540 = vld [vmem:[%s1 + $0xa0] sm:$0xff]
        %v541 = vld [vmem:[%s1 + $0xa8] sm:$0xff]
        %v542 = vld [vmem:[%s2 + $0xa0] sm:$0xff]
        %v543 = vld [vmem:[%s2 + $0xa8] sm:$0xff]
        %545 = vset.pattern.permute.xlu0 0
        %546 = vperm.xlu0 %545, %v542
        %v547 = vpop.permute.xlu0 %546
        %550 = vset.pattern.permute.xlu0 0
        %551 = vperm.xlu0 %550, %v543
        %v552 = vpop.permute.xlu0 %551
        %v555 = vsel %vm368, %v540, 0
        %v558 = vsel %vm368, %v541, 0
        %560 = vmatpush.msra.mxu0 0.0
        %561 = vmatpush.msra.mxu0 0.0
        %562 = vmatpush.msra.mxu0 0.0
        %563 = vmatpush.msra.mxu0 0.0
        %564 = vmatpush.msra.mxu0 0.0
        %565 = vmatpush.msra.mxu0 0.0
        %566 = vmatpush.msra.mxu0 0.0
        %567 = vmatpush.msra.mxu0 0.0
        %568 = vmatpush.msra.mxu0 %v539
        %569 = vmatpush.msra.mxu0 %v538
        %570 = vmatpush.msra.mxu0 %v537
        %571 = vmatpush.msra.mxu0 %v536
        %572 = vmatpush.msra.mxu0 %v535
        %573 = vmatpush.msra.mxu0 %v534
        %574 = vmatpush.msra.mxu0 %v533
        %575 = vmatpush.msra.mxu0 %v532
        %576 = vmatmul.f32.gmra.mxu0 %v555
        %v577 = vpop.f32.mrf.mxu0
        %v578 = vadd.f32 %v547, %v577
        %579 = vmatmul.f32.gmra.mxu0 %v558
        %v580 = vpop.f32.mrf.mxu0
        %v581 = vadd.f32 %v552, %v580
        %582 = vdwg.mxu0
        %583 = vst [vmem:[%s207] sm:$0xff] %v578
        %584 = vst [vmem:[%s207 + $0x8] sm:$0xff] %v581
        %s585 = sand.u32 %s93, 1
        %s586 = scalar_lea.sflag [#allocation4], %s585
        %s587 = sand.u32 %s93, 1
        %s588 = smul.addr %s587, 16
        %s589 = scalar_lea.vmem [#allocation3], %s588
        // Predicated region
        $region71: #{tpu_custom_call.1} parent=65 // pred_check
          %p590 = pneg %p103
        $region72: #{tpu_custom_call.1} parent=65 // pred_check_branch
          %592 = sbr.rel (%p590) target = $region74
        $region73: #{tpu_custom_call.1} parent=65 // pred_region
          %594 = vsyncadd %s586, 0
          %s595 = smul.addr %s17, 8
          %s596 = scalar_lea.hbm %s3, %s595
          %s597 = sshll.u32 %s589, 4
          %s598 = int_to_ptr.vmem [resolvable:$true] %s597
          %s599 = sshll.u32 %s596, 4
          %s600 = int_to_ptr.hbm [resolvable:$true] %s599
          %605 = dma.vmem_to_hbm [thread:$0]  %s598, 256, %s600, %s586, 128, 384, 8
        $region74: #{tpu_custom_call.1} parent=65 // pred_fallthru
          _
      $region66: #{tpu_custom_call.1} parent=5 // pred_fallthru
        _
      %p606 = scmp.le.s32.totalorder 2, %s12
      // Predicated region
      $region75: #{tpu_custom_call.1} parent=5 // pred_check
        %p607 = pneg %p606
      $region76: #{tpu_custom_call.1} parent=5 // pred_check_branch
        %609 = sbr.rel (%p607) target = $region78
      $region77: #{tpu_custom_call.1} parent=5 // pred_region
        %s610 = ssub.s32 %s12, 2
        // Predicated region
        $region79: #{tpu_custom_call.1} parent=77 // pred_check
          %p611 = pneg %p109
        $region80: #{tpu_custom_call.1} parent=77 // pred_check_branch
          %613 = sbr.rel (%p611) target = $region82
        $region81: #{tpu_custom_call.1} parent=77 // pred_region
          %s614 = sand.u32 %s94, 1
          %s615 = scalar_lea.sflag [#allocation4], %s614
          %s616 = sand.u32 %s94, 1
          %s617 = smul.addr %s616, 16
          %s618 = scalar_lea.vmem [#allocation3], %s617
          %620 = dma.done %s615, 256
        $region82: #{tpu_custom_call.1} parent=77 // pred_fallthru
          _
      $region78: #{tpu_custom_call.1} parent=5 // pred_fallthru
        _
    $region6: #{tpu_custom_call.1} parent=1 // loop_footer
      %s16 = sadd.s32 1, %s12
    $region7: #{tpu_custom_call.1} parent=1 // loop_footer_branch
      %11 = sbr.rel target = $region3
    $region8: #{tpu_custom_call.1} parent=1 // loop_exit
      _
    %621 = vsyncpa [#allocation4], 1
    %s622 = scalar_lea.sflag [#allocation4], 1
    %623 = vsyncpa %s622, 1

</llo_original>
